<compile_context>
chip_gen: v5e
topology: v5e:2x2
jax: 0.10.0
libtpu: 0.0.40
codegen_flags: <defaults>
</compile_context>

<pallas_src>
import functools

import jax
import jax.numpy as jnp
from jax.experimental import pallas as pl
from jax.experimental.pallas import tpu as pltpu


def _round_up(n: int, m: int) -> int:
    return ((n + m - 1) // m) * m


def _auto_tm(batch: int) -> int:
    """Pick the batch tile.

    Big tiles amortize the per-grid-step pipeline overhead (128-row tiles sit near
    ~30% of HBM roofline vs ~85% at 512+), capped at 1024 rows (VMEM-safe on
    v5e/v6e/v7x), while keeping the grid >= 2 whenever the batch allows it so both
    v7x TensorCores get work through the "parallel" batch axis.
    """
    bp = _round_up(max(batch, 1), 8)
    if bp <= 16:
        return bp
    return min(1024, _round_up((bp + 1) // 2, 8))


def prepare_params(params):
    """One-time lane-dense weight packing.  Do this once and reuse across calls.

    cat(h1, y) @ W2 == h1 @ W2[:h] + y @ W2[h:]  (exact for the module's 1-D inputs),
    and the fc1 matmul + y @ W2b are fused into one MXU pass via
        W_in = [[W1, 0], [0, W2b]]   of shape (d1 + d2, 2 * hp)
    so the kernel's first dot yields [x @ W1 | y @ W2b] split at a 128-aligned lane.
    """
    w1, b1, w2, b2, w3, b3 = (params[k] for k in ("w1", "b1", "w2", "b2", "w3", "b3"))
    d1, h = w1.shape
    d2 = w2.shape[0] - h
    dout = w3.shape[1]
    assert w2.shape == (h + d2, h) and d2 > 0
    hp = _round_up(h, 128)
    din = d1 + d2
    f32 = jnp.float32

    w_in = (jnp.zeros((din, 2 * hp), f32)
            .at[:d1, :h].set(w1.astype(f32))          # lanes [0:hp)   -> x @ W1
            .at[d1:, hp:hp + h].set(w2[h:].astype(f32)))  # lanes [hp:2hp) -> y @ W2b
    w2a = jnp.zeros((hp, hp), f32).at[:h, :h].set(w2[:h].astype(f32))
    w3p = jnp.zeros((hp, dout), f32).at[:h, :].set(w3.astype(f32))
    b1p = jnp.zeros((1, hp), f32).at[0, :h].set(b1.astype(f32))
    b2p = jnp.zeros((1, hp), f32).at[0, :h].set(b2.astype(f32))
    b3p = b3.astype(f32).reshape(1, dout)

    return {"w_in": w_in, "w2a": w2a, "w3": w3p, "b1": b1p, "b2": b2p, "b3": b3p,
            "dims": (d1, d2, h, dout, hp)}


def _ffhybrid_kernel(xy_ref, w_in_ref, b1_ref, w2a_ref, b2_ref, w3_ref, b3_ref,
                     o_ref, *, hp: int):
    # One fused MXU pass over the packed [x | y] tile:
    #   [x | y] @ [[W1, 0], [0, W2b]] = [ x@W1 (lanes 0:hp) | y@W2b (lanes hp:2hp) ]
    fused = jnp.dot(xy_ref[...], w_in_ref[...], preferred_element_type=jnp.float32)

    h1 = jnp.maximum(fused[:, :hp] + b1_ref[...], 0.0)      # relu(fc1(x)); 128-aligned slice
    y_w2b = fused[:, hp:]                                    # y-half of fc2 (folded concat)

    h2 = jnp.maximum(
        jnp.dot(h1, w2a_ref[...], preferred_element_type=jnp.float32)
        + y_w2b + b2_ref[...], 0.0)                          # relu(fc2(cat(h1, y)))

    out = jnp.dot(h2, w3_ref[...], preferred_element_type=jnp.float32) + b3_ref[...]
    o_ref[...] = out.astype(o_ref.dtype)                     # fc3 (tanh unused in torch forward)


def ffhybrid_forward_batched(x, y, prepared, *, tm: int | None = None):
    """Batched forward. x: (B, input_1_dim), y: (B, input_2_dim) -> (B, output_dim)."""
    d1, d2, h, dout, hp = prepared["dims"]
    B = x.shape[0]
    assert x.shape == (B, d1) and y.shape == (B, d2)

    # Pack [x | y]: single input DMA stream, no lane zero-fill in HBM (the block's
    # last dim equals the full array dim so the compiler pads inside VMEM).  At most
    # 7 zero rows are appended so the batch is sublane (8) aligned.
    xy = jnp.concatenate([x.astype(jnp.float32), y.astype(jnp.float32)], axis=1)
    bp = _round_up(B, 8)
    if bp != B:
        xy = jnp.pad(xy, ((0, bp - B), (0, 0)))

    tm = _auto_tm(B) if tm is None else tm
    assert tm % 8 == 0
    grid = (pl.cdiv(bp, tm),)
    din = d1 + d2

    row = lambda shape: pl.BlockSpec(shape, lambda i: (i, 0))   # batch-tiled operand
    rep = lambda shape: pl.BlockSpec(shape, lambda i: (0, 0))   # grid-invariant weights

    out = pl.pallas_call(
        functools.partial(_ffhybrid_kernel, hp=hp),
        out_shape=jax.ShapeDtypeStruct((bp, dout), jnp.float32),
        grid=grid,
        in_specs=[row((tm, din)),
                  rep((din, 2 * hp)), rep((1, hp)),
                  rep((hp, hp)), rep((1, hp)),
                  rep((hp, dout)), rep((1, dout))],
        out_specs=row((tm, dout)),
        compiler_params=pltpu.CompilerParams(
            dimension_semantics=("parallel",)),   # independent batch rows -> megacore
    )(xy, prepared["w_in"], prepared["b1"], prepared["w2a"], prepared["b2"],
      prepared["w3"], prepared["b3"])

    return out if bp == B else out[:B]


def ffhybrid_forward(x, y, prepared):
    """Per-sample forward matching the PyTorch module: x (D1,), y (D2,) -> (Dout,)."""
    out = ffhybrid_forward_batched(x.reshape(1, -1), y.reshape(1, -1), prepared)
    return out.reshape(-1)


def init_params(key, input_1_dim, input_2_dim, hidden_dim, output_dim):
    ks = jax.random.split(key, 6)
    scale = 0.1
    return {
        "w1": scale * jax.random.normal(ks[0], (input_1_dim, hidden_dim), jnp.float32),
        "b1": scale * jax.random.normal(ks[1], (hidden_dim,), jnp.float32),
        "w2": scale * jax.random.normal(ks[2], (hidden_dim + input_2_dim, hidden_dim), jnp.float32),
        "b2": scale * jax.random.normal(ks[3], (hidden_dim,), jnp.float32),
        "w3": scale * jax.random.normal(ks[4], (hidden_dim, output_dim), jnp.float32),
        "b3": scale * jax.random.normal(ks[5], (output_dim,), jnp.float32),
    }


def reference_forward(x, y, params):
    hi = jax.lax.Precision.HIGHEST
    h1 = jnp.maximum(jnp.dot(x, params["w1"], precision=hi) + params["b1"], 0.0)
    cat = jnp.concatenate([h1, y], axis=0)
    h2 = jnp.maximum(jnp.dot(cat, params["w2"], precision=hi) + params["b2"], 0.0)
    return jnp.dot(h2, params["w3"], precision=hi) + params["b3"]


if __name__ == "__main__":
    input_1_dim, input_2_dim, hidden_dim, output_dim = 16, 8, 32, 4
    batch = 8

    key = jax.random.PRNGKey(0)
    kx, ky, kp = jax.random.split(key, 3)
    X = jax.random.normal(kx, (batch, input_1_dim), jnp.float32)
    Y = jax.random.normal(ky, (batch, input_2_dim), jnp.float32)
    params = init_params(kp, input_1_dim, input_2_dim, hidden_dim, output_dim)

    prepared = prepare_params(params)   # one-time weight packing; reuse across calls

    # Batched kernel vs. vmapped reference of the per-sample PyTorch semantics.
    out_b = jax.block_until_ready(ffhybrid_forward_batched(X, Y, prepared))
    ref_b = jax.vmap(lambda xx, yy: reference_forward(xx, yy, params))(X, Y)
    assert out_b.shape == (batch, output_dim)
    assert jnp.allclose(out_b, ref_b, atol=1e-5, rtol=1e-5)

    # Odd batch (exercises the sublane row-padding path).
    out_odd = jax.block_until_ready(ffhybrid_forward_batched(X[:5], Y[:5], prepared))
    assert out_odd.shape == (5, output_dim)
    assert jnp.allclose(out_odd, ref_b[:5], atol=1e-5, rtol=1e-5)

    # Per-sample (1-D) path, matching the original module's calling convention.
    out_1 = jax.block_until_ready(ffhybrid_forward(X[0], Y[0], prepared))
    assert out_1.shape == (output_dim,)
    assert jnp.allclose(out_1, ref_b[0], atol=1e-5, rtol=1e-5)

    print("KERNEL_OK")
</pallas_src>

<mosaic_0001>
module attributes {stable_mosaic.version = 11 : i64} {
  func.func @_ffhybrid_kernel(%arg0: i32, %arg1: memref<8x24xf32, #tpu.memory_space<vmem>>, %arg2: memref<24x256xf32, #tpu.memory_space<vmem>>, %arg3: memref<1x128xf32, #tpu.memory_space<vmem>>, %arg4: memref<128x128xf32, #tpu.memory_space<vmem>>, %arg5: memref<1x128xf32, #tpu.memory_space<vmem>>, %arg6: memref<128x4xf32, #tpu.memory_space<vmem>>, %arg7: memref<1x4xf32, #tpu.memory_space<vmem>>, %arg8: memref<8x4xf32, #tpu.memory_space<vmem>>) attributes {dimension_semantics = [#tpu.dimension_semantics<parallel>], iteration_bounds = array<i64: 1>, scalar_prefetch = 0 : i64, scratch_operands = 0 : i64, tpu.core_type = #tpu.core_type<tc>, window_params = [{transform_indices = @transform_0, window_bounds = array<i64: 8, 24>}, {pipeline_mode = #tpu.pipeline_mode<synchronous>, transform_indices = @transform_1, window_bounds = array<i64: 24, 256>}, {pipeline_mode = #tpu.pipeline_mode<synchronous>, transform_indices = @transform_2, window_bounds = array<i64: 1, 128>}, {pipeline_mode = #tpu.pipeline_mode<synchronous>, transform_indices = @transform_3, window_bounds = array<i64: 128, 128>}, {pipeline_mode = #tpu.pipeline_mode<synchronous>, transform_indices = @transform_4, window_bounds = array<i64: 1, 128>}, {pipeline_mode = #tpu.pipeline_mode<synchronous>, transform_indices = @transform_5, window_bounds = array<i64: 128, 4>}, {pipeline_mode = #tpu.pipeline_mode<synchronous>, transform_indices = @transform_6, window_bounds = array<i64: 1, 4>}, {transform_indices = @transform_7, window_bounds = array<i64: 8, 4>}]} {
    %c0 = arith.constant 0 : index
    %c0_0 = arith.constant 0 : index
    %0 = vector.load %arg1[%c0, %c0_0] : memref<8x24xf32, #tpu.memory_space<vmem>>, vector<8x24xf32>
    %c0_1 = arith.constant 0 : index
    %c0_2 = arith.constant 0 : index
    %1 = vector.load %arg2[%c0_1, %c0_2] : memref<24x256xf32, #tpu.memory_space<vmem>>, vector<24x256xf32>
    %cst = arith.constant dense<0.000000e+00> : vector<8x256xf32>
    %2 = tpu.matmul %0, %1, %cst {dimension_numbers = #tpu.dot_dimension_numbers<[1], [0], [0], [1], [0, 0, 1, 1], [], []>} : vector<8x24xf32>, vector<24x256xf32>, vector<8x256xf32> -> vector<8x256xf32>
    %3 = vector.extract_strided_slice %2 {offsets = [0, 0], sizes = [8, 128], strides = [1, 1]} : vector<8x256xf32> to vector<8x128xf32>
    %c0_3 = arith.constant 0 : index
    %c0_4 = arith.constant 0 : index
    %4 = vector.load %arg3[%c0_3, %c0_4] : memref<1x128xf32, #tpu.memory_space<vmem>>, vector<1x128xf32>
    %5 = vector.broadcast %4 : vector<1x128xf32> to vector<8x128xf32>
    %6 = arith.addf %3, %5 : vector<8x128xf32>
    %cst_5 = arith.constant 0.000000e+00 : f32
    %7 = vector.broadcast %cst_5 : f32 to vector<8x128xf32>
    %8 = arith.maximumf %6, %7 : vector<8x128xf32>
    %9 = vector.extract_strided_slice %2 {offsets = [0, 128], sizes = [8, 128], strides = [1, 1]} : vector<8x256xf32> to vector<8x128xf32>
    %c0_6 = arith.constant 0 : index
    %c0_7 = arith.constant 0 : index
    %10 = vector.load %arg4[%c0_6, %c0_7] : memref<128x128xf32, #tpu.memory_space<vmem>>, vector<128x128xf32>
    %cst_8 = arith.constant dense<0.000000e+00> : vector<8x128xf32>
    %11 = tpu.matmul %8, %10, %cst_8 {dimension_numbers = #tpu.dot_dimension_numbers<[1], [0], [0], [1], [0, 0, 1, 1], [], []>} : vector<8x128xf32>, vector<128x128xf32>, vector<8x128xf32> -> vector<8x128xf32>
    %12 = arith.addf %11, %9 : vector<8x128xf32>
    %c0_9 = arith.constant 0 : index
    %c0_10 = arith.constant 0 : index
    %13 = vector.load %arg5[%c0_9, %c0_10] : memref<1x128xf32, #tpu.memory_space<vmem>>, vector<1x128xf32>
    %14 = vector.broadcast %13 : vector<1x128xf32> to vector<8x128xf32>
    %15 = arith.addf %12, %14 : vector<8x128xf32>
    %cst_11 = arith.constant 0.000000e+00 : f32
    %16 = vector.broadcast %cst_11 : f32 to vector<8x128xf32>
    %17 = arith.maximumf %15, %16 : vector<8x128xf32>
    %c0_12 = arith.constant 0 : index
    %c0_13 = arith.constant 0 : index
    %18 = vector.load %arg6[%c0_12, %c0_13] : memref<128x4xf32, #tpu.memory_space<vmem>>, vector<128x4xf32>
    %cst_14 = arith.constant dense<0.000000e+00> : vector<8x4xf32>
    %19 = tpu.matmul %17, %18, %cst_14 {dimension_numbers = #tpu.dot_dimension_numbers<[1], [0], [0], [1], [0, 0, 1, 1], [], []>} : vector<8x128xf32>, vector<128x4xf32>, vector<8x4xf32> -> vector<8x4xf32>
    %c0_15 = arith.constant 0 : index
    %c0_16 = arith.constant 0 : index
    %20 = vector.load %arg7[%c0_15, %c0_16] : memref<1x4xf32, #tpu.memory_space<vmem>>, vector<1x4xf32>
    %21 = vector.broadcast %20 : vector<1x4xf32> to vector<8x4xf32>
    %22 = arith.addf %19, %21 : vector<8x4xf32>
    %c0_17 = arith.constant 0 : index
    %c0_18 = arith.constant 0 : index
    %23 = vector.load %arg8[%c0_17, %c0_18] : memref<8x4xf32, #tpu.memory_space<vmem>>, vector<8x4xf32>
    tpu.vector_store %arg8[%c0_17, %c0_18], %22 {strides = array<i32>} : memref<8x4xf32, #tpu.memory_space<vmem>>, vector<8x4xf32>,
    return
  }
  func.func @transform_0(%arg0: i32) -> (i32, i32) {
    %c0_i32 = arith.constant 0 : i32
    %c0_i32_0 = arith.constant 0 : i32
    return %arg0, %c0_i32 : i32, i32
  }
  func.func @transform_1(%arg0: i32) -> (i32, i32) {
    %c0_i32 = arith.constant 0 : i32
    %c0_i32_0 = arith.constant 0 : i32
    %c0_i32_1 = arith.constant 0 : i32
    return %c0_i32, %c0_i32_0 : i32, i32
  }
  func.func @transform_2(%arg0: i32) -> (i32, i32) {
    %c0_i32 = arith.constant 0 : i32
    %c0_i32_0 = arith.constant 0 : i32
    %c0_i32_1 = arith.constant 0 : i32
    return %c0_i32, %c0_i32_0 : i32, i32
  }
  func.func @transform_3(%arg0: i32) -> (i32, i32) {
    %c0_i32 = arith.constant 0 : i32
    %c0_i32_0 = arith.constant 0 : i32
    %c0_i32_1 = arith.constant 0 : i32
    return %c0_i32, %c0_i32_0 : i32, i32
  }
  func.func @transform_4(%arg0: i32) -> (i32, i32) {
    %c0_i32 = arith.constant 0 : i32
    %c0_i32_0 = arith.constant 0 : i32
    %c0_i32_1 = arith.constant 0 : i32
    return %c0_i32, %c0_i32_0 : i32, i32
  }
  func.func @transform_5(%arg0: i32) -> (i32, i32) {
    %c0_i32 = arith.constant 0 : i32
    %c0_i32_0 = arith.constant 0 : i32
    %c0_i32_1 = arith.constant 0 : i32
    return %c0_i32, %c0_i32_0 : i32, i32
  }
  func.func @transform_6(%arg0: i32) -> (i32, i32) {
    %c0_i32 = arith.constant 0 : i32
    %c0_i32_0 = arith.constant 0 : i32
    %c0_i32_1 = arith.constant 0 : i32
    return %c0_i32, %c0_i32_0 : i32, i32
  }
  func.func @transform_7(%arg0: i32) -> (i32, i32) {
    %c0_i32 = arith.constant 0 : i32
    %c0_i32_0 = arith.constant 0 : i32
    return %arg0, %c0_i32 : i32, i32
  }
}

</mosaic_0001>

<llo_original>
// kernel: tpu_custom_call.1
$region0: #{tpu_custom_call.1}
  #allocation0 [shape = 'u32[]', space=smem, size = 0x4, offset = 0x4, fixed_abs, tag = 'smem constant byte address 0x4 - core index']
  #allocation1 [shape = 'u32[72,128]{1,0:T(1,128)}', space=vmem, size = 0x9000, scoped, tag = 'internal scratch']
  %s0 = inlined_call_operand.hbm [shape: f32[8,24], index: 0, kind: input, shape index: {}]
  %s1 = inlined_call_operand.hbm [shape: f32[24,256], index: 1, kind: input, shape index: {}]
  %s2 = inlined_call_operand.vmem [shape: f32[1,128], index: 2, kind: input, shape index: {}]
  %s3 = inlined_call_operand.vmem [shape: f32[128,128], index: 3, kind: input, shape index: {}]
  %s4 = inlined_call_operand.vmem [shape: f32[1,128], index: 4, kind: input, shape index: {}]
  %s5 = inlined_call_operand.vmem [shape: f32[128,4], index: 5, kind: input, shape index: {}]
  %s6 = inlined_call_operand.vmem [shape: f32[1,4], index: 6, kind: input, shape index: {}]
  %s7 = inlined_call_operand.vmem [shape: f32[8,4], index: 7, kind: output, shape index: {}]
  %s8 = sld [smem:[#allocation0]]
  $region46: #{tpu_custom_call.1} parent=0
    _
  %s10 = ssub.s32 1, %s8
  %s11 = scalar_select 0, %s10, %s8
  $region1: #{tpu_custom_call.1} parent=0
    #allocation2 [shape = 'u8[4096]{0}', space=vmem, size = 0x1000, scoped, tag = 'input window, operand 0, single buffered']
    #allocation3 [shape = 's32[1]{0}', space=sflag, size = 0x4, scoped, tag = 'scoped memory for tpu_custom_call.1']
    #allocation4 [shape = 'u8[24576]{0}', space=vmem, size = 0x6000, scoped, tag = 'input window, operand 1, single buffered']
    #allocation5 [shape = 's32[1]{0}', space=sflag, size = 0x4, scoped, tag = 'scoped memory for tpu_custom_call.1']
    %12 = vsyncpa [#allocation3], 0
    %13 = vsyncpa [#allocation5], 0
    // Predicated region
    $region2: #{tpu_custom_call.1} parent=1 // pred_check
      _
    $region3: #{tpu_custom_call.1} parent=1 // pred_check_branch
      %15 = sbr.rel (0) target = $region5
    $region4: #{tpu_custom_call.1} parent=1 // pred_region
      %17 = vsyncadd [#allocation3], 0
      %s19 = sshll.u32 %s0, 4
      %s20 = int_to_ptr.hbm [resolvable:$true] %s19
      %s21 = sshll.u32 [#allocation2], 4
      %s22 = int_to_ptr.vmem [resolvable:$true] %s21
      %24 = dma.hbm_to_vmem [thread:$0]  %s20, 128, %s22, [#allocation3]
    $region5: #{tpu_custom_call.1} parent=1 // pred_fallthru
      _
    // Predicated region
    $region6: #{tpu_custom_call.1} parent=1 // pred_check
      _
    $region7: #{tpu_custom_call.1} parent=1 // pred_check_branch
      %26 = sbr.rel (0) target = $region9
    $region8: #{tpu_custom_call.1} parent=1 // pred_region
      %28 = vsyncadd [#allocation5], 0
      %s29 = sshll.u32 %s1, 4
      %s30 = int_to_ptr.hbm [resolvable:$true] %s29
      %s31 = sshll.u32 [#allocation4], 4
      %s32 = int_to_ptr.vmem [resolvable:$true] %s31
      %37 = dma.hbm_to_vmem [thread:$0]  %s30, 768, %s32, [#allocation5], 256, 256, 16
    $region9: #{tpu_custom_call.1} parent=1 // pred_fallthru
      _
    // Predicated region
    $region10: #{tpu_custom_call.1} parent=1 // pred_check
      _
    $region11: #{tpu_custom_call.1} parent=1 // pred_check_branch
      %39 = sbr.rel (0) target = $region13
    $region12: #{tpu_custom_call.1} parent=1 // pred_region
      _
    $region13: #{tpu_custom_call.1} parent=1 // pred_fallthru
      _
    // Predicated region
    $region14: #{tpu_custom_call.1} parent=1 // pred_check
      _
    $region15: #{tpu_custom_call.1} parent=1 // pred_check_branch
      %41 = sbr.rel (0) target = $region17
    $region16: #{tpu_custom_call.1} parent=1 // pred_region
      _
    $region17: #{tpu_custom_call.1} parent=1 // pred_fallthru
      _
    // Predicated region
    $region18: #{tpu_custom_call.1} parent=1 // pred_check
      _
    $region19: #{tpu_custom_call.1} parent=1 // pred_check_branch
      %43 = sbr.rel (0) target = $region21
    $region20: #{tpu_custom_call.1} parent=1 // pred_region
      _
    $region21: #{tpu_custom_call.1} parent=1 // pred_fallthru
      _
    // Predicated region
    $region22: #{tpu_custom_call.1} parent=1 // pred_check
      _
    $region23: #{tpu_custom_call.1} parent=1 // pred_check_branch
      %45 = sbr.rel (0) target = $region25
    $region24: #{tpu_custom_call.1} parent=1 // pred_region
      _
    $region25: #{tpu_custom_call.1} parent=1 // pred_fallthru
      _
    // Predicated region
    $region26: #{tpu_custom_call.1} parent=1 // pred_check
      _
    $region27: #{tpu_custom_call.1} parent=1 // pred_check_branch
      %47 = sbr.rel (0) target = $region29
    $region28: #{tpu_custom_call.1} parent=1 // pred_region
      _
    $region29: #{tpu_custom_call.1} parent=1 // pred_fallthru
      _
    // Predicated region
    $region30: #{tpu_custom_call.1} parent=1 // pred_check
      _
    $region31: #{tpu_custom_call.1} parent=1 // pred_check_branch
      %49 = sbr.rel (0) target = $region33
    $region32: #{tpu_custom_call.1} parent=1 // pred_region
      %51 = dma.done [#allocation3], 128
    $region33: #{tpu_custom_call.1} parent=1 // pred_fallthru
      _
    // Predicated region
    $region34: #{tpu_custom_call.1} parent=1 // pred_check
      _
    $region35: #{tpu_custom_call.1} parent=1 // pred_check_branch
      %53 = sbr.rel (0) target = $region37
    $region36: #{tpu_custom_call.1} parent=1 // pred_region
      %55 = dma.done [#allocation5], 768
    $region37: #{tpu_custom_call.1} parent=1 // pred_fallthru
      _
    %v56 = vld [vmem:[#allocation2] sm:$0xff]
    %v57 = vld [vmem:[#allocation4] sm:$0xff]
    %v58 = vld [vmem:[#allocation4 + $0x8] sm:$0xff]
    %v59 = vld [vmem:[#allocation4 + $0x10] sm:$0xff]
    %v60 = vld [vmem:[#allocation4 + $0x18] sm:$0xff]
    %v61 = vld [vmem:[#allocation4 + $0x20] sm:$0xff]
    %v62 = vld [vmem:[#allocation4 + $0x28] sm:$0xff]
    %vm63 = vcmask 195584
    %v65 = vsel %vm63, %v56, 0
    %67 = vmatpush.msra.mxu0 0.0
    %68 = vmatpush.msra.mxu0 0.0
    %69 = vmatpush.msra.mxu0 0.0
    %70 = vmatpush.msra.mxu0 0.0
    %71 = vmatpush.msra.mxu0 0.0
    %72 = vmatpush.msra.mxu0 0.0
    %73 = vmatpush.msra.mxu0 0.0
    %74 = vmatpush.msra.mxu0 0.0
    %75 = vmatpush.msra.mxu0 0.0
    %76 = vmatpush.msra.mxu0 0.0
    %77 = vmatpush.msra.mxu0 0.0
    %78 = vmatpush.msra.mxu0 0.0
    %79 = vmatpush.msra.mxu0 0.0
    %80 = vmatpush.msra.mxu0 %v61
    %81 = vmatpush.msra.mxu0 %v59
    %82 = vmatpush.msra.mxu0 %v57
    %83 = vmatmul.f32.gmra.mxu0 %v65
    %v84 = vpop.f32.mrf.mxu0
    %v85 = vadd.f32 0.0, %v84
    %86 = vdwg.mxu0
    %87 = vmatpush.msra.mxu0 0.0
    %88 = vmatpush.msra.mxu0 0.0
    %89 = vmatpush.msra.mxu0 0.0
    %90 = vmatpush.msra.mxu0 0.0
    %91 = vmatpush.msra.mxu0 0.0
    %92 = vmatpush.msra.mxu0 0.0
    %93 = vmatpush.msra.mxu0 0.0
    %94 = vmatpush.msra.mxu0 0.0
    %95 = vmatpush.msra.mxu0 0.0
    %96 = vmatpush.msra.mxu0 0.0
    %97 = vmatpush.msra.mxu0 0.0
    %98 = vmatpush.msra.mxu0 0.0
    %99 = vmatpush.msra.mxu0 0.0
    %100 = vmatpush.msra.mxu0 %v62
    %101 = vmatpush.msra.mxu0 %v60
    %102 = vmatpush.msra.mxu0 %v58
    %103 = vmatmul.f32.gmra.mxu0 %v65
    %v104 = vpop.f32.mrf.mxu0
    %v105 = vadd.f32 0.0, %v104
    %106 = vdwg.mxu0
    %v107 = vld [vmem:[%s2] sm:$0x1]
    %v109 = vperm.slane %v107, 0
    %v111 = vadd.f32 %v85, %v109
    %v112 = vmax.f32 %v111, 0.0
    %v113 = vld [vmem:[%s3] sm:$0xff]
    %v114 = vld [vmem:[%s3 + $0x8] sm:$0xff]
    %v115 = vld [vmem:[%s3 + $0x10] sm:$0xff]
    %v116 = vld [vmem:[%s3 + $0x18] sm:$0xff]
    %v117 = vld [vmem:[%s3 + $0x20] sm:$0xff]
    %v118 = vld [vmem:[%s3 + $0x28] sm:$0xff]
    %v119 = vld [vmem:[%s3 + $0x30] sm:$0xff]
    %v120 = vld [vmem:[%s3 + $0x38] sm:$0xff]
    %v121 = vld [vmem:[%s3 + $0x40] sm:$0xff]
    %v122 = vld [vmem:[%s3 + $0x48] sm:$0xff]
    %v123 = vld [vmem:[%s3 + $0x50] sm:$0xff]
    %v124 = vld [vmem:[%s3 + $0x58] sm:$0xff]
    %v125 = vld [vmem:[%s3 + $0x60] sm:$0xff]
    %v126 = vld [vmem:[%s3 + $0x68] sm:$0xff]
    %v127 = vld [vmem:[%s3 + $0x70] sm:$0xff]
    %v128 = vld [vmem:[%s3 + $0x78] sm:$0xff]
    %129 = vmatpush.msra.mxu0 %v128
    %130 = vmatpush.msra.mxu0 %v127
    %131 = vmatpush.msra.mxu0 %v126
    %132 = vmatpush.msra.mxu0 %v125
    %133 = vmatpush.msra.mxu0 %v124
    %134 = vmatpush.msra.mxu0 %v123
    %135 = vmatpush.msra.mxu0 %v122
    %136 = vmatpush.msra.mxu0 %v121
    %137 = vmatpush.msra.mxu0 %v120
    %138 = vmatpush.msra.mxu0 %v119
    %139 = vmatpush.msra.mxu0 %v118
    %140 = vmatpush.msra.mxu0 %v117
    %141 = vmatpush.msra.mxu0 %v116
    %142 = vmatpush.msra.mxu0 %v115
    %143 = vmatpush.msra.mxu0 %v114
    %144 = vmatpush.msra.mxu0 %v113
    %145 = vmatmul.f32.gmra.mxu0 %v112
    %v146 = vpop.f32.mrf.mxu0
    %v147 = vadd.f32 %v105, %v146
    %148 = vdwg.mxu0
    %v149 = vld [vmem:[%s4] sm:$0x1]
    %v151 = vperm.slane %v149, 0
    %v153 = vadd.f32 %v147, %v151
    %v154 = vmax.f32 %v153, 0.0
    %v155 = vld [vmem:[%s5] sm:$0xff]
    %v156 = vld [vmem:[%s5 + $0x8] sm:$0xff]
    %v157 = vld [vmem:[%s5 + $0x10] sm:$0xff]
    %v158 = vld [vmem:[%s5 + $0x18] sm:$0xff]
    %v159 = vld [vmem:[%s5 + $0x20] sm:$0xff]
    %v160 = vld [vmem:[%s5 + $0x28] sm:$0xff]
    %v161 = vld [vmem:[%s5 + $0x30] sm:$0xff]
    %v162 = vld [vmem:[%s5 + $0x38] sm:$0xff]
    %v163 = vld [vmem:[%s5 + $0x40] sm:$0xff]
    %v164 = vld [vmem:[%s5 + $0x48] sm:$0xff]
    %v165 = vld [vmem:[%s5 + $0x50] sm:$0xff]
    %v166 = vld [vmem:[%s5 + $0x58] sm:$0xff]
    %v167 = vld [vmem:[%s5 + $0x60] sm:$0xff]
    %v168 = vld [vmem:[%s5 + $0x68] sm:$0xff]
    %v169 = vld [vmem:[%s5 + $0x70] sm:$0xff]
    %v170 = vld [vmem:[%s5 + $0x78] sm:$0xff]
    %v171 = vld [vmem:[%s6] sm:$0x1]
    %v173 = vperm.slane %v171, 0
    %175 = vmatpush.msra.mxu0 %v170
    %176 = vmatpush.msra.mxu0 %v169
    %177 = vmatpush.msra.mxu0 %v168
    %178 = vmatpush.msra.mxu0 %v167
    %179 = vmatpush.msra.mxu0 %v166
    %180 = vmatpush.msra.mxu0 %v165
    %181 = vmatpush.msra.mxu0 %v164
    %182 = vmatpush.msra.mxu0 %v163
    %183 = vmatpush.msra.mxu0 %v162
    %184 = vmatpush.msra.mxu0 %v161
    %185 = vmatpush.msra.mxu0 %v160
    %186 = vmatpush.msra.mxu0 %v159
    %187 = vmatpush.msra.mxu0 %v158
    %188 = vmatpush.msra.mxu0 %v157
    %189 = vmatpush.msra.mxu0 %v156
    %190 = vmatpush.msra.mxu0 %v155
    %191 = vmatmul.f32.gmra.mxu0 %v154
    %v192 = vpop.f32.mrf.mxu0
    %v193 = vadd.f32 %v173, %v192
    %194 = vdwg.mxu0
    %vm195 = vcmask 31744
    %196 = vst.msk [vmem:[%s7] sm:$0xff] %vm195, %v193
    // Predicated region
    $region38: #{tpu_custom_call.1} parent=1 // pred_check
      _
    $region39: #{tpu_custom_call.1} parent=1 // pred_check_branch
      %198 = sbr.rel (0) target = $region41
    $region40: #{tpu_custom_call.1} parent=1 // pred_region
      _
    $region41: #{tpu_custom_call.1} parent=1 // pred_fallthru
      _
    // Predicated region
    $region42: #{tpu_custom_call.1} parent=1 // pred_check
      _
    $region43: #{tpu_custom_call.1} parent=1 // pred_check_branch
      %200 = sbr.rel (0) target = $region45
    $region44: #{tpu_custom_call.1} parent=1 // pred_region
      _
    $region45: #{tpu_custom_call.1} parent=1 // pred_fallthru
      _
    %201 = vsyncpa [#allocation3], 1
    %202 = vsyncpa [#allocation5], 1

</llo_original>
